<compile_context>
chip_gen: v7x
topology: tpu7x:2x2x1
jax: 0.10.0
libtpu: 0.0.40
codegen_flags: <defaults>
</compile_context>

<pallas_src>
import jax
import jax.numpy as jnp
from jax.experimental import pallas as pl
from jax.experimental.pallas import tpu as pltpu


def trend_model_kernel(x_ref, w1_ref, b1_ref, pool_ref, w2_ref, b2_ref,
                       wc_ref, bc_ref, out_ref):
    # x_ref: (tb, S*D) bf16 — one lane-dense row per sample.
    # W1' is block-diagonal (kron(I_S, w1)) so this single matmul applies w1
    # to every segment of every sample.
    h = jnp.dot(x_ref[...], w1_ref[...],
                preferred_element_type=jnp.float32)          # (tb, S*H) f32
    h = jnp.maximum(h + b1_ref[...], 0.0)                    # ReLU in f32

    # Temporal mean-pool over segments: constant (S*H, H) matrix, no reshape,
    # no tile-dependent operand.
    pooled = jnp.dot(h, pool_ref[...],
                     preferred_element_type=jnp.float32)     # (tb, H)

    emb = jnp.tanh(
        jnp.dot(pooled, w2_ref[...], preferred_element_type=jnp.float32)
        + b2_ref[...])                                       # (tb, O)

    # Classifier padded to 128 lanes -> lane-dense (unmasked) bf16 store.
    logits = (jnp.dot(emb, wc_ref[...], preferred_element_type=jnp.float32)
              + bc_ref[...])                                 # (tb, 128)
    out_ref[...] = logits.astype(out_ref.dtype)


def _round_up(v, m):
    return ((v + m - 1) // m) * m


def _lane_pad(n):
    return _round_up(n, 128)


def _pick_batch_tile(B, per_row_bytes):
    """Generation-aware batch tile: big enough to amortize per-step overhead,
    small enough that double-buffered streams + intermediates fit VMEM."""
    try:
        vmem_cap = pltpu.get_tpu_info().vmem_capacity_bytes
    except Exception:
        vmem_cap = 64 * 1024 * 1024            # conservative (v7x per-TC VMEM)
    budget = int(vmem_cap * 0.45)              # leave headroom for weights/compiler
    tb = max(8, (budget // per_row_bytes) // 8 * 8)
    if B >= 16:
        # Keep >= 2 grid steps so the "parallel" batch axis can shard across
        # both TensorCores on v7x megacore (harmless on single-TC v5e/v6e).
        tb = min(tb, _round_up(pl.cdiv(B, 2), 8))
    if tb >= B:
        return B, vmem_cap                     # single full-extent block
    return tb, vmem_cap


def trend_model_forward(x, w1, b1, w2, b2, wc, bc):
    B, S, D = x.shape
    H = w1.shape[1]
    O = w2.shape[1]
    C = wc.shape[1]                            # number of classes (= 2)
    LANES = 128

    # --- restructure parameters (tiny, one-time, tile-independent) ----------
    # Fold segments into lanes: one row per sample, S*D (= 128) lanes.
    x2d = x.reshape(B, S * D).astype(jnp.bfloat16)

    # Block-diagonal per-segment projection and tiled bias.
    w1_big = jnp.kron(jnp.eye(S, dtype=jnp.float32),
                      w1.astype(jnp.float32)).astype(jnp.bfloat16)   # (S*D, S*H)
    b1_big = jnp.tile(b1.astype(jnp.float32), (S,)).reshape(1, S * H)

    # Mean pool over segments as a constant (S*H, H) matrix.
    pool = jnp.kron(jnp.full((S, 1), 1.0 / S, dtype=jnp.float32),
                    jnp.eye(H, dtype=jnp.float32))                   # (S*H, H)

    w2_f = w2.astype(jnp.float32)
    b2_2d = b2.reshape(1, O).astype(jnp.float32)
    # Classifier zero-padded to 128 lanes for a lane-dense store.
    wc_pad = jnp.zeros((O, LANES), jnp.float32).at[:, :C].set(wc.astype(jnp.float32))
    bc_pad = jnp.zeros((1, LANES), jnp.float32).at[:, :C].set(
        bc.reshape(1, C).astype(jnp.float32))

    # --- tiling / VMEM budgeting (lane-padded, per flattened row) -----------
    per_row = (2 * _lane_pad(S * D) * 2        # x bf16, double-buffered
               + 2 * LANES * 2                 # out bf16, double-buffered
               + _lane_pad(S * H) * 4          # h f32
               + 3 * LANES * 4)                # pooled / emb / logits f32
    tb, vmem_cap = _pick_batch_tile(B, per_row)
    n_tiles = pl.cdiv(B, tb)

    weight_bytes = (w1_big.size * 2 + b1_big.size * 4 + pool.size * 4
                    + w2_f.size * 4 + b2_2d.size * 4
                    + wc_pad.size * 4 + bc_pad.size * 4)
    vmem_need = tb * per_row + weight_bytes
    vmem_limit = int(min(max(2 * vmem_need, 32 << 20), int(0.85 * vmem_cap)))

    cost = pl.CostEstimate(
        flops=(2 * B * (S * D) * (S * H)       # block-diag segment projection
               + 2 * B * (S * H) * H           # mean-pool matmul
               + 2 * B * H * O                 # embedding projection
               + 2 * B * O * LANES),           # padded classifier
        transcendentals=B * O,                 # tanh
        bytes_accessed=(x2d.size * 2 + weight_bytes + B * LANES * 2),
    )

    const = lambda shape: pl.BlockSpec(shape, lambda i: (0, 0))

    out = pl.pallas_call(
        trend_model_kernel,
        out_shape=jax.ShapeDtypeStruct((B, LANES), jnp.bfloat16),
        grid=(n_tiles,),
        in_specs=[
            pl.BlockSpec((tb, S * D), lambda i: (i, 0)),   # x: pipelined over batch
            const((S * D, S * H)),                         # W1' (VMEM-resident)
            const((1, S * H)),
            const((S * H, H)),                             # pool matrix
            const((H, O)),
            const((1, O)),
            const((O, LANES)),
            const((1, LANES)),
        ],
        out_specs=pl.BlockSpec((tb, LANES), lambda i: (i, 0)),
        compiler_params=pltpu.CompilerParams(
            dimension_semantics=("parallel",),
            vmem_limit_bytes=vmem_limit),
        cost_estimate=cost,
    )(x2d, w1_big, b1_big, pool, w2_f, b2_2d, wc_pad, bc_pad)

    return out[:B, :C].astype(jnp.float32)


def reference_forward(x, w1, b1, w2, b2, wc, bc):
    h = jnp.maximum(jnp.einsum('bsd,dh->bsh', x, w1) + b1, 0.0)
    pooled = jnp.mean(h, axis=1)
    emb = jnp.tanh(pooled @ w2 + b2)
    return emb @ wc + bc


if __name__ == "__main__":
    # Shapes consistent with the module's config:
    #   segment_dim = 16, hidden = 32, output_dim = 32, num_segments = 8, batch = 2
    B, S, D, H, O = 2, 8, 16, 32, 32

    key = jax.random.PRNGKey(0)
    kx, k1, k2, k3, k4, k5, k6 = jax.random.split(key, 7)

    x  = jax.random.normal(kx, (B, S, D), dtype=jnp.float32)
    w1 = jax.random.normal(k1, (D, H), dtype=jnp.float32) * 0.1
    b1 = jax.random.normal(k2, (H,), dtype=jnp.float32) * 0.1
    w2 = jax.random.normal(k3, (H, O), dtype=jnp.float32) * 0.1
    b2 = jax.random.normal(k4, (O,), dtype=jnp.float32) * 0.1
    wc = jax.random.normal(k5, (O, 2), dtype=jnp.float32) * 0.1   # Linear(O, 2).weight.T
    bc = jax.random.normal(k6, (2,), dtype=jnp.float32) * 0.1

    out = jax.block_until_ready(trend_model_forward(x, w1, b1, w2, b2, wc, bc))
    ref = reference_forward(x, w1, b1, w2, b2, wc, bc)

    assert out.shape == (B, 2)
    # bf16 inputs / bf16 output writeback -> loosened tolerance vs f32 reference.
    assert jnp.allclose(out, ref, atol=1e-2, rtol=1e-2), "mismatch vs JAX reference"

    print("KERNEL_OK")
</pallas_src>

<mosaic_0001>
module attributes {stable_mosaic.version = 11 : i64} {
  func.func @trend_model_kernel(%arg0: i32, %arg1: memref<2x128xbf16, #tpu.memory_space<vmem>>, %arg2: memref<128x256xbf16, #tpu.memory_space<vmem>>, %arg3: memref<1x256xf32, #tpu.memory_space<vmem>>, %arg4: memref<256x32xf32, #tpu.memory_space<vmem>>, %arg5: memref<32x32xf32, #tpu.memory_space<vmem>>, %arg6: memref<1x32xf32, #tpu.memory_space<vmem>>, %arg7: memref<32x128xf32, #tpu.memory_space<vmem>>, %arg8: memref<1x128xf32, #tpu.memory_space<vmem>>, %arg9: memref<2x128xbf16, #tpu.memory_space<vmem>>) attributes {dimension_semantics = [#tpu.dimension_semantics<parallel>], iteration_bounds = array<i64: 1>, scalar_prefetch = 0 : i64, scratch_operands = 0 : i64, tpu.core_type = #tpu.core_type<tc>, window_params = [{transform_indices = @transform_0, window_bounds = array<i64: 2, 128>}, {pipeline_mode = #tpu.pipeline_mode<synchronous>, transform_indices = @transform_1, window_bounds = array<i64: 128, 256>}, {pipeline_mode = #tpu.pipeline_mode<synchronous>, transform_indices = @transform_2, window_bounds = array<i64: 1, 256>}, {pipeline_mode = #tpu.pipeline_mode<synchronous>, transform_indices = @transform_3, window_bounds = array<i64: 256, 32>}, {pipeline_mode = #tpu.pipeline_mode<synchronous>, transform_indices = @transform_4, window_bounds = array<i64: 32, 32>}, {pipeline_mode = #tpu.pipeline_mode<synchronous>, transform_indices = @transform_5, window_bounds = array<i64: 1, 32>}, {pipeline_mode = #tpu.pipeline_mode<synchronous>, transform_indices = @transform_6, window_bounds = array<i64: 32, 128>}, {pipeline_mode = #tpu.pipeline_mode<synchronous>, transform_indices = @transform_7, window_bounds = array<i64: 1, 128>}, {transform_indices = @transform_8, window_bounds = array<i64: 2, 128>}]} {
    %c0 = arith.constant 0 : index
    %c0_0 = arith.constant 0 : index
    %0 = vector.load %arg1[%c0, %c0_0] : memref<2x128xbf16, #tpu.memory_space<vmem>>, vector<2x128xbf16>
    %c0_1 = arith.constant 0 : index
    %c0_2 = arith.constant 0 : index
    %1 = vector.load %arg2[%c0_1, %c0_2] : memref<128x256xbf16, #tpu.memory_space<vmem>>, vector<128x256xbf16>
    %cst = arith.constant dense<0.000000e+00> : vector<2x256xf32>
    %2 = tpu.matmul %0, %1, %cst {dimension_numbers = #tpu.dot_dimension_numbers<[1], [0], [0], [1], [0, 0, 1, 1], [], []>} : vector<2x128xbf16>, vector<128x256xbf16>, vector<2x256xf32> -> vector<2x256xf32>
    %c0_3 = arith.constant 0 : index
    %c0_4 = arith.constant 0 : index
    %3 = vector.load %arg3[%c0_3, %c0_4] : memref<1x256xf32, #tpu.memory_space<vmem>>, vector<1x256xf32>
    %4 = vector.broadcast %3 : vector<1x256xf32> to vector<2x256xf32>
    %5 = arith.addf %2, %4 : vector<2x256xf32>
    %cst_5 = arith.constant 0.000000e+00 : f32
    %6 = vector.broadcast %cst_5 : f32 to vector<2x256xf32>
    %7 = arith.maximumf %5, %6 : vector<2x256xf32>
    %c0_6 = arith.constant 0 : index
    %c0_7 = arith.constant 0 : index
    %8 = vector.load %arg4[%c0_6, %c0_7] : memref<256x32xf32, #tpu.memory_space<vmem>>, vector<256x32xf32>
    %cst_8 = arith.constant dense<0.000000e+00> : vector<2x32xf32>
    %9 = tpu.matmul %7, %8, %cst_8 {dimension_numbers = #tpu.dot_dimension_numbers<[1], [0], [0], [1], [0, 0, 1, 1], [], []>} : vector<2x256xf32>, vector<256x32xf32>, vector<2x32xf32> -> vector<2x32xf32>
    %c0_9 = arith.constant 0 : index
    %c0_10 = arith.constant 0 : index
    %10 = vector.load %arg5[%c0_9, %c0_10] : memref<32x32xf32, #tpu.memory_space<vmem>>, vector<32x32xf32>
    %cst_11 = arith.constant dense<0.000000e+00> : vector<2x32xf32>
    %11 = tpu.matmul %9, %10, %cst_11 {dimension_numbers = #tpu.dot_dimension_numbers<[1], [0], [0], [1], [0, 0, 1, 1], [], []>} : vector<2x32xf32>, vector<32x32xf32>, vector<2x32xf32> -> vector<2x32xf32>
    %c0_12 = arith.constant 0 : index
    %c0_13 = arith.constant 0 : index
    %12 = vector.load %arg6[%c0_12, %c0_13] : memref<1x32xf32, #tpu.memory_space<vmem>>, vector<1x32xf32>
    %13 = vector.broadcast %12 : vector<1x32xf32> to vector<2x32xf32>
    %14 = arith.addf %11, %13 : vector<2x32xf32>
    %15 = math.tanh %14 : vector<2x32xf32>
    %c0_14 = arith.constant 0 : index
    %c0_15 = arith.constant 0 : index
    %16 = vector.load %arg7[%c0_14, %c0_15] : memref<32x128xf32, #tpu.memory_space<vmem>>, vector<32x128xf32>
    %cst_16 = arith.constant dense<0.000000e+00> : vector<2x128xf32>
    %17 = tpu.matmul %15, %16, %cst_16 {dimension_numbers = #tpu.dot_dimension_numbers<[1], [0], [0], [1], [0, 0, 1, 1], [], []>} : vector<2x32xf32>, vector<32x128xf32>, vector<2x128xf32> -> vector<2x128xf32>
    %c0_17 = arith.constant 0 : index
    %c0_18 = arith.constant 0 : index
    %18 = vector.load %arg8[%c0_17, %c0_18] : memref<1x128xf32, #tpu.memory_space<vmem>>, vector<1x128xf32>
    %19 = vector.broadcast %18 : vector<1x128xf32> to vector<2x128xf32>
    %20 = arith.addf %17, %19 : vector<2x128xf32>
    %21 = arith.truncf %20 : vector<2x128xf32> to vector<2x128xbf16>
    %c0_19 = arith.constant 0 : index
    %c0_20 = arith.constant 0 : index
    %22 = vector.load %arg9[%c0_19, %c0_20] : memref<2x128xbf16, #tpu.memory_space<vmem>>, vector<2x128xbf16>
    tpu.vector_store %arg9[%c0_19, %c0_20], %21 {strides = array<i32>} : memref<2x128xbf16, #tpu.memory_space<vmem>>, vector<2x128xbf16>,
    return
  }
  func.func @transform_0(%arg0: i32) -> (i32, i32) {
    %c0_i32 = arith.constant 0 : i32
    %c0_i32_0 = arith.constant 0 : i32
    return %arg0, %c0_i32 : i32, i32
  }
  func.func @transform_1(%arg0: i32) -> (i32, i32) {
    %c0_i32 = arith.constant 0 : i32
    %c0_i32_0 = arith.constant 0 : i32
    %c0_i32_1 = arith.constant 0 : i32
    return %c0_i32, %c0_i32_0 : i32, i32
  }
  func.func @transform_2(%arg0: i32) -> (i32, i32) {
    %c0_i32 = arith.constant 0 : i32
    %c0_i32_0 = arith.constant 0 : i32
    %c0_i32_1 = arith.constant 0 : i32
    return %c0_i32, %c0_i32_0 : i32, i32
  }
  func.func @transform_3(%arg0: i32) -> (i32, i32) {
    %c0_i32 = arith.constant 0 : i32
    %c0_i32_0 = arith.constant 0 : i32
    %c0_i32_1 = arith.constant 0 : i32
    return %c0_i32, %c0_i32_0 : i32, i32
  }
  func.func @transform_4(%arg0: i32) -> (i32, i32) {
    %c0_i32 = arith.constant 0 : i32
    %c0_i32_0 = arith.constant 0 : i32
    %c0_i32_1 = arith.constant 0 : i32
    return %c0_i32, %c0_i32_0 : i32, i32
  }
  func.func @transform_5(%arg0: i32) -> (i32, i32) {
    %c0_i32 = arith.constant 0 : i32
    %c0_i32_0 = arith.constant 0 : i32
    %c0_i32_1 = arith.constant 0 : i32
    return %c0_i32, %c0_i32_0 : i32, i32
  }
  func.func @transform_6(%arg0: i32) -> (i32, i32) {
    %c0_i32 = arith.constant 0 : i32
    %c0_i32_0 = arith.constant 0 : i32
    %c0_i32_1 = arith.constant 0 : i32
    return %c0_i32, %c0_i32_0 : i32, i32
  }
  func.func @transform_7(%arg0: i32) -> (i32, i32) {
    %c0_i32 = arith.constant 0 : i32
    %c0_i32_0 = arith.constant 0 : i32
    %c0_i32_1 = arith.constant 0 : i32
    return %c0_i32, %c0_i32_0 : i32, i32
  }
  func.func @transform_8(%arg0: i32) -> (i32, i32) {
    %c0_i32 = arith.constant 0 : i32
    %c0_i32_0 = arith.constant 0 : i32
    return %arg0, %c0_i32 : i32, i32
  }
}

</mosaic_0001>

<llo_original>
// kernel: tpu_custom_call.1
$region0: #{tpu_custom_call.1}
  #allocation0 [shape = 'u32[]', space=smem, size = 0x4, offset = 0x4, fixed_abs, tag = 'smem constant byte address 0x4 - core index']
  #allocation1 [shape = 'u32[144,128]{1,0:T(1,128)}', space=vmem, size = 0x12000, scoped, tag = 'internal scratch']
  %s0 = inlined_call_operand.vmem [shape: bf16[2,128], index: 0, kind: input, shape index: {}]
  %s1 = inlined_call_operand.vmem [shape: bf16[128,256], index: 1, kind: input, shape index: {}]
  %s2 = inlined_call_operand.vmem [shape: f32[1,256], index: 2, kind: input, shape index: {}]
  %s3 = inlined_call_operand.vmem [shape: f32[256,32], index: 3, kind: input, shape index: {}]
  %s4 = inlined_call_operand.vmem [shape: f32[32,32], index: 4, kind: input, shape index: {}]
  %s5 = inlined_call_operand.vmem [shape: f32[1,32], index: 5, kind: input, shape index: {}]
  %s6 = inlined_call_operand.vmem [shape: f32[32,128], index: 6, kind: input, shape index: {}]
  %s7 = inlined_call_operand.vmem [shape: f32[1,128], index: 7, kind: input, shape index: {}]
  %s8 = inlined_call_operand.hbm [shape: bf16[2,128], index: 8, kind: output, shape index: {}]
  %s9 = sld [smem:[#allocation0]]
  $region42: #{tpu_custom_call.1} parent=0
    _
  %s11 = ssub.s32 1, %s9
  %s12 = scalar_select 0, %s11, %s9
  $region1: #{tpu_custom_call.1} parent=0
    #allocation2 [shape = 'u8[512]{0}', space=vmem, size = 0x400, scoped, tag = 'output window, operand 0, single buffered']
    #allocation3 [shape = 's32[1]{0}', space=sflag, size = 0x4, scoped, tag = 'scoped memory for tpu_custom_call.1']
    %13 = vsyncpa [#allocation3], 0
    // Predicated region
    $region2: #{tpu_custom_call.1} parent=1 // pred_check
      _
    $region3: #{tpu_custom_call.1} parent=1 // pred_check_branch
      %15 = sbr.rel (0) target = $region5
    $region4: #{tpu_custom_call.1} parent=1 // pred_region
      _
    $region5: #{tpu_custom_call.1} parent=1 // pred_fallthru
      _
    // Predicated region
    $region6: #{tpu_custom_call.1} parent=1 // pred_check
      _
    $region7: #{tpu_custom_call.1} parent=1 // pred_check_branch
      %17 = sbr.rel (0) target = $region9
    $region8: #{tpu_custom_call.1} parent=1 // pred_region
      _
    $region9: #{tpu_custom_call.1} parent=1 // pred_fallthru
      _
    // Predicated region
    $region10: #{tpu_custom_call.1} parent=1 // pred_check
      _
    $region11: #{tpu_custom_call.1} parent=1 // pred_check_branch
      %19 = sbr.rel (0) target = $region13
    $region12: #{tpu_custom_call.1} parent=1 // pred_region
      _
    $region13: #{tpu_custom_call.1} parent=1 // pred_fallthru
      _
    // Predicated region
    $region14: #{tpu_custom_call.1} parent=1 // pred_check
      _
    $region15: #{tpu_custom_call.1} parent=1 // pred_check_branch
      %21 = sbr.rel (0) target = $region17
    $region16: #{tpu_custom_call.1} parent=1 // pred_region
      _
    $region17: #{tpu_custom_call.1} parent=1 // pred_fallthru
      _
    // Predicated region
    $region18: #{tpu_custom_call.1} parent=1 // pred_check
      _
    $region19: #{tpu_custom_call.1} parent=1 // pred_check_branch
      %23 = sbr.rel (0) target = $region21
    $region20: #{tpu_custom_call.1} parent=1 // pred_region
      _
    $region21: #{tpu_custom_call.1} parent=1 // pred_fallthru
      _
    // Predicated region
    $region22: #{tpu_custom_call.1} parent=1 // pred_check
      _
    $region23: #{tpu_custom_call.1} parent=1 // pred_check_branch
      %25 = sbr.rel (0) target = $region25
    $region24: #{tpu_custom_call.1} parent=1 // pred_region
      _
    $region25: #{tpu_custom_call.1} parent=1 // pred_fallthru
      _
    // Predicated region
    $region26: #{tpu_custom_call.1} parent=1 // pred_check
      _
    $region27: #{tpu_custom_call.1} parent=1 // pred_check_branch
      %27 = sbr.rel (0) target = $region29
    $region28: #{tpu_custom_call.1} parent=1 // pred_region
      _
    $region29: #{tpu_custom_call.1} parent=1 // pred_fallthru
      _
    // Predicated region
    $region30: #{tpu_custom_call.1} parent=1 // pred_check
      _
    $region31: #{tpu_custom_call.1} parent=1 // pred_check_branch
      %29 = sbr.rel (0) target = $region33
    $region32: #{tpu_custom_call.1} parent=1 // pred_region
      _
    $region33: #{tpu_custom_call.1} parent=1 // pred_fallthru
      _
    %v31 = vld [vmem:[%s0] sm:$0x1]
    %v32 = vld [vmem:[%s1] sm:$0xff]
    %v33 = vld [vmem:[%s1 + $0x8] sm:$0xff]
    %v34 = vld [vmem:[%s1 + $0x10] sm:$0xff]
    %v35 = vld [vmem:[%s1 + $0x18] sm:$0xff]
    %v36 = vld [vmem:[%s1 + $0x20] sm:$0xff]
    %v37 = vld [vmem:[%s1 + $0x28] sm:$0xff]
    %v38 = vld [vmem:[%s1 + $0x30] sm:$0xff]
    %v39 = vld [vmem:[%s1 + $0x38] sm:$0xff]
    %v40 = vld [vmem:[%s1 + $0x40] sm:$0xff]
    %v41 = vld [vmem:[%s1 + $0x48] sm:$0xff]
    %v42 = vld [vmem:[%s1 + $0x50] sm:$0xff]
    %v43 = vld [vmem:[%s1 + $0x58] sm:$0xff]
    %v44 = vld [vmem:[%s1 + $0x60] sm:$0xff]
    %v45 = vld [vmem:[%s1 + $0x68] sm:$0xff]
    %v46 = vld [vmem:[%s1 + $0x70] sm:$0xff]
    %v47 = vld [vmem:[%s1 + $0x78] sm:$0xff]
    %v48 = vld [vmem:[%s2] sm:$0x3]
    %v50 = vlaneseq
    %v51 = vshrl.u32 %v50, 7
    %v52 = vsub.s32 0, %v51
    %v53 = vrot.slane %v48, %v52
    %v54 = vlaneseq
    %v55 = vshrl.u32 %v54, 7
    %v56 = vsub.s32 1, %v55
    %v57 = vrot.slane %v48, %v56
    %v76 = vunpack.c.l.b16 %v32
    %v77 = vunpack.c.h.b16 %v32
    %v78 = vunpack.c.l.b16 %v33
    %v79 = vunpack.c.h.b16 %v33
    %v80 = vunpack.c.l.b16 %v34
    %v81 = vunpack.c.h.b16 %v34
    %v82 = vunpack.c.l.b16 %v35
    %v83 = vunpack.c.h.b16 %v35
    %v84 = vunpack.c.l.b16 %v36
    %v85 = vunpack.c.h.b16 %v36
    %v86 = vunpack.c.l.b16 %v37
    %v87 = vunpack.c.h.b16 %v37
    %v88 = vunpack.c.l.b16 %v38
    %v89 = vunpack.c.h.b16 %v38
    %v90 = vunpack.c.l.b16 %v39
    %v91 = vunpack.c.h.b16 %v39
    %v92 = vunpack.c.l.b16 %v40
    %v93 = vunpack.c.h.b16 %v40
    %v94 = vunpack.c.l.b16 %v41
    %v95 = vunpack.c.h.b16 %v41
    %v96 = vunpack.c.l.b16 %v42
    %v97 = vunpack.c.h.b16 %v42
    %v98 = vunpack.c.l.b16 %v43
    %v99 = vunpack.c.h.b16 %v43
    %v100 = vunpack.c.l.b16 %v44
    %v101 = vunpack.c.h.b16 %v44
    %v102 = vunpack.c.l.b16 %v45
    %v103 = vunpack.c.h.b16 %v45
    %v104 = vunpack.c.l.b16 %v46
    %v105 = vunpack.c.h.b16 %v46
    %v106 = vunpack.c.l.b16 %v47
    %v107 = vunpack.c.h.b16 %v47
    %v108 = vpack.c.b16 %v78, %v76
    %v109 = vpack.c.b16 %v79, %v77
    %v110 = vpack.c.b16 %v82, %v80
    %v111 = vpack.c.b16 %v83, %v81
    %v112 = vpack.c.b16 %v86, %v84
    %v113 = vpack.c.b16 %v87, %v85
    %v114 = vpack.c.b16 %v90, %v88
    %v115 = vpack.c.b16 %v91, %v89
    %v116 = vpack.c.b16 %v94, %v92
    %v117 = vpack.c.b16 %v95, %v93
    %v118 = vpack.c.b16 %v98, %v96
    %v119 = vpack.c.b16 %v99, %v97
    %v120 = vpack.c.b16 %v102, %v100
    %v121 = vpack.c.b16 %v103, %v101
    %v122 = vpack.c.b16 %v106, %v104
    %v123 = vpack.c.b16 %v107, %v105
    %140 = vmatprep.subr.bf16.mxu0 %v109
    %141 = vmatpush1.bf16.msra.mxu0 %v108
    %142 = vmatprep.subr.bf16.mxu0 %v111
    %143 = vmatpush1.bf16.msra.mxu0 %v110
    %144 = vmatprep.subr.bf16.mxu0 %v113
    %145 = vmatpush1.bf16.msra.mxu0 %v112
    %146 = vmatprep.subr.bf16.mxu0 %v115
    %147 = vmatpush1.bf16.msra.mxu0 %v114
    %148 = vmatprep.subr.bf16.mxu0 %v117
    %149 = vmatpush1.bf16.msra.mxu0 %v116
    %150 = vmatprep.subr.bf16.mxu0 %v119
    %151 = vmatpush1.bf16.msra.mxu0 %v118
    %152 = vmatprep.subr.bf16.mxu0 %v121
    %153 = vmatpush1.bf16.msra.mxu0 %v120
    %154 = vmatprep.subr.bf16.mxu0 %v123
    %155 = vmatpush1.bf16.msra.mxu0 %v122
    %156 = vmatprep.subr.bf16.mxu0 0
    %157 = vmatpush1.bf16.msra.mxu0 0
    %158 = vmatprep.subr.bf16.mxu0 0
    %159 = vmatpush1.bf16.msra.mxu0 0
    %160 = vmatprep.subr.bf16.mxu0 0
    %161 = vmatpush1.bf16.msra.mxu0 0
    %162 = vmatprep.subr.bf16.mxu0 0
    %163 = vmatpush1.bf16.msra.mxu0 0
    %164 = vmatprep.subr.bf16.mxu0 0
    %165 = vmatpush1.bf16.msra.mxu0 0
    %166 = vmatprep.subr.bf16.mxu0 0
    %167 = vmatpush1.bf16.msra.mxu0 0
    %168 = vmatprep.subr.bf16.mxu0 0
    %169 = vmatpush1.bf16.msra.mxu0 0
    %170 = vmatprep.subr.bf16.mxu0 0
    %171 = vmatpush1.bf16.msra.mxu0 0
    %172 = vmatprep.mubr.bf16.mxu0 0
    %173 = vmatmul.mubr.bf16.gmra.mrb[0].mxu0 %v31
    %v174 = vpop.f32.mrb[0].mxu0
    %v175 = vadd.f32 %v53, %v174
    %v176 = vpop.f32.mrb[0].mxu0
    %v177 = vadd.f32 %v57, %v176
    %v178 = vpop.f32.mrb[0].mxu0
    %v179 = vpop.f32.mrb[0].mxu0
    %180 = vdwg.mxu0
    %v181 = vmax.f32 %v175, 0.0
    %v182 = vmax.f32 %v177, 0.0
    %v183 = vld [vmem:[%s3] sm:$0xff]
    %v184 = vld [vmem:[%s3 + $0x8] sm:$0xff]
    %v185 = vld [vmem:[%s3 + $0x10] sm:$0xff]
    %v186 = vld [vmem:[%s3 + $0x18] sm:$0xff]
    %v187 = vld [vmem:[%s3 + $0x20] sm:$0xff]
    %v188 = vld [vmem:[%s3 + $0x28] sm:$0xff]
    %v189 = vld [vmem:[%s3 + $0x30] sm:$0xff]
    %v190 = vld [vmem:[%s3 + $0x38] sm:$0xff]
    %v191 = vld [vmem:[%s3 + $0x40] sm:$0xff]
    %v192 = vld [vmem:[%s3 + $0x48] sm:$0xff]
    %v193 = vld [vmem:[%s3 + $0x50] sm:$0xff]
    %v194 = vld [vmem:[%s3 + $0x58] sm:$0xff]
    %v195 = vld [vmem:[%s3 + $0x60] sm:$0xff]
    %v196 = vld [vmem:[%s3 + $0x68] sm:$0xff]
    %v197 = vld [vmem:[%s3 + $0x70] sm:$0xff]
    %v198 = vld [vmem:[%s3 + $0x78] sm:$0xff]
    %v199 = vld [vmem:[%s3 + $0x80] sm:$0xff]
    %v200 = vld [vmem:[%s3 + $0x88] sm:$0xff]
    %v201 = vld [vmem:[%s3 + $0x90] sm:$0xff]
    %v202 = vld [vmem:[%s3 + $0x98] sm:$0xff]
    %v203 = vld [vmem:[%s3 + $0xa0] sm:$0xff]
    %v204 = vld [vmem:[%s3 + $0xa8] sm:$0xff]
    %v205 = vld [vmem:[%s3 + $0xb0] sm:$0xff]
    %v206 = vld [vmem:[%s3 + $0xb8] sm:$0xff]
    %v207 = vld [vmem:[%s3 + $0xc0] sm:$0xff]
    %v208 = vld [vmem:[%s3 + $0xc8] sm:$0xff]
    %v209 = vld [vmem:[%s3 + $0xd0] sm:$0xff]
    %v210 = vld [vmem:[%s3 + $0xd8] sm:$0xff]
    %v211 = vld [vmem:[%s3 + $0xe0] sm:$0xff]
    %v212 = vld [vmem:[%s3 + $0xe8] sm:$0xff]
    %v213 = vld [vmem:[%s3 + $0xf0] sm:$0xff]
    %v214 = vld [vmem:[%s3 + $0xf8] sm:$0xff]
    %215 = vmatprep.subr.mxu0 0.0
    %216 = vmatpush1.msra.mxu0 %v183
    %217 = vmatprep.subr.mxu0 0.0
    %218 = vmatpush1.msra.mxu0 %v184
    %219 = vmatprep.subr.mxu0 0.0
    %220 = vmatpush1.msra.mxu0 %v185
    %221 = vmatprep.subr.mxu0 0.0
    %222 = vmatpush1.msra.mxu0 %v186
    %223 = vmatprep.subr.mxu0 0.0
    %224 = vmatpush1.msra.mxu0 %v187
    %225 = vmatprep.subr.mxu0 0.0
    %226 = vmatpush1.msra.mxu0 %v188
    %227 = vmatprep.subr.mxu0 0.0
    %228 = vmatpush1.msra.mxu0 %v189
    %229 = vmatprep.subr.mxu0 0.0
    %230 = vmatpush1.msra.mxu0 %v190
    %231 = vmatprep.subr.mxu0 0.0
    %232 = vmatpush1.msra.mxu0 %v191
    %233 = vmatprep.subr.mxu0 0.0
    %234 = vmatpush1.msra.mxu0 %v192
    %235 = vmatprep.subr.mxu0 0.0
    %236 = vmatpush1.msra.mxu0 %v193
    %237 = vmatprep.subr.mxu0 0.0
    %238 = vmatpush1.msra.mxu0 %v194
    %239 = vmatprep.subr.mxu0 0.0
    %240 = vmatpush1.msra.mxu0 %v195
    %241 = vmatprep.subr.mxu0 0.0
    %242 = vmatpush1.msra.mxu0 %v196
    %243 = vmatprep.subr.mxu0 0.0
    %244 = vmatpush1.msra.mxu0 %v197
    %245 = vmatprep.subr.mxu0 0.0
    %246 = vmatpush1.msra.mxu0 %v198
    %247 = vmatprep.subr.mxu0 0.0
    %248 = vmatpush1.msra.mxu0 %v199
    %249 = vmatprep.subr.mxu0 0.0
    %250 = vmatpush1.msra.mxu0 %v200
    %251 = vmatprep.subr.mxu0 0.0
    %252 = vmatpush1.msra.mxu0 %v201
    %253 = vmatprep.subr.mxu0 0.0
    %254 = vmatpush1.msra.mxu0 %v202
    %255 = vmatprep.subr.mxu0 0.0
    %256 = vmatpush1.msra.mxu0 %v203
    %257 = vmatprep.subr.mxu0 0.0
    %258 = vmatpush1.msra.mxu0 %v204
    %259 = vmatprep.subr.mxu0 0.0
    %260 = vmatpush1.msra.mxu0 %v205
    %261 = vmatprep.subr.mxu0 0.0
    %262 = vmatpush1.msra.mxu0 %v206
    %263 = vmatprep.subr.mxu0 0.0
    %264 = vmatpush1.msra.mxu0 %v207
    %265 = vmatprep.subr.mxu0 0.0
    %266 = vmatpush1.msra.mxu0 %v208
    %267 = vmatprep.subr.mxu0 0.0
    %268 = vmatpush1.msra.mxu0 %v209
    %269 = vmatprep.subr.mxu0 0.0
    %270 = vmatpush1.msra.mxu0 %v210
    %271 = vmatprep.subr.mxu0 0.0
    %272 = vmatpush1.msra.mxu0 %v211
    %273 = vmatprep.subr.mxu0 0.0
    %274 = vmatpush1.msra.mxu0 %v212
    %275 = vmatprep.subr.mxu0 0.0
    %276 = vmatpush1.msra.mxu0 %v213
    %277 = vmatprep.subr.mxu0 0.0
    %278 = vmatpush1.msra.mxu0 %v214
    %279 = vmatprep.mubr.f32.mxu0 %v182
    %280 = vmatmul.mubr.f32.gmra.mrb[0].mxu0 %v181
    %v281 = vpop.f32.mrb[0].mxu0
    %v282 = vadd.f32 0.0, %v281
    %v283 = vpop.f32.mrb[0].mxu0
    %284 = vdwg.mxu0
    %v285 = vld [vmem:[%s4] sm:$0xff]
    %v286 = vld [vmem:[%s4 + $0x8] sm:$0xff]
    %v287 = vld [vmem:[%s4 + $0x10] sm:$0xff]
    %v288 = vld [vmem:[%s4 + $0x18] sm:$0xff]
    %v289 = vld [vmem:[%s5] sm:$0x1]
    %v291 = vlaneseq
    %v292 = vshrl.u32 %v291, 7
    %v293 = vsub.s32 0, %v292
    %v294 = vrot.slane %v289, %v293
    %vm296 = vcmask 261120
    %v298 = vsel %vm296, %v282, 0
    %300 = vmatprep.subr.mxu0 0.0
    %301 = vmatpush1.msra.mxu0 %v285
    %302 = vmatprep.subr.mxu0 0.0
    %303 = vmatpush1.msra.mxu0 %v286
    %304 = vmatprep.subr.mxu0 0.0
    %305 = vmatpush1.msra.mxu0 %v287
    %306 = vmatprep.subr.mxu0 0.0
    %307 = vmatpush1.msra.mxu0 %v288
    %308 = vmatprep.subr.mxu0 0.0
    %309 = vmatpush1.msra.mxu0 0.0
    %310 = vmatprep.subr.mxu0 0.0
    %311 = vmatpush1.msra.mxu0 0.0
    %312 = vmatprep.subr.mxu0 0.0
    %313 = vmatpush1.msra.mxu0 0.0
    %314 = vmatprep.subr.mxu0 0.0
    %315 = vmatpush1.msra.mxu0 0.0
    %316 = vmatprep.subr.mxu0 0.0
    %317 = vmatpush1.msra.mxu0 0.0
    %318 = vmatprep.subr.mxu0 0.0
    %319 = vmatpush1.msra.mxu0 0.0
    %320 = vmatprep.subr.mxu0 0.0
    %321 = vmatpush1.msra.mxu0 0.0
    %322 = vmatprep.subr.mxu0 0.0
    %323 = vmatpush1.msra.mxu0 0.0
    %324 = vmatprep.subr.mxu0 0.0
    %325 = vmatpush1.msra.mxu0 0.0
    %326 = vmatprep.subr.mxu0 0.0
    %327 = vmatpush1.msra.mxu0 0.0
    %328 = vmatprep.subr.mxu0 0.0
    %329 = vmatpush1.msra.mxu0 0.0
    %330 = vmatprep.subr.mxu0 0.0
    %331 = vmatpush1.msra.mxu0 0.0
    %332 = vmatprep.subr.mxu0 0.0
    %333 = vmatpush1.msra.mxu0 0.0
    %334 = vmatprep.subr.mxu0 0.0
    %335 = vmatpush1.msra.mxu0 0.0
    %336 = vmatprep.subr.mxu0 0.0
    %337 = vmatpush1.msra.mxu0 0.0
    %338 = vmatprep.subr.mxu0 0.0
    %339 = vmatpush1.msra.mxu0 0.0
    %340 = vmatprep.subr.mxu0 0.0
    %341 = vmatpush1.msra.mxu0 0.0
    %342 = vmatprep.subr.mxu0 0.0
    %343 = vmatpush1.msra.mxu0 0.0
    %344 = vmatprep.subr.mxu0 0.0
    %345 = vmatpush1.msra.mxu0 0.0
    %346 = vmatprep.subr.mxu0 0.0
    %347 = vmatpush1.msra.mxu0 0.0
    %348 = vmatprep.subr.mxu0 0.0
    %349 = vmatpush1.msra.mxu0 0.0
    %350 = vmatprep.subr.mxu0 0.0
    %351 = vmatpush1.msra.mxu0 0.0
    %352 = vmatprep.subr.mxu0 0.0
    %353 = vmatpush1.msra.mxu0 0.0
    %354 = vmatprep.subr.mxu0 0.0
    %355 = vmatpush1.msra.mxu0 0.0
    %356 = vmatprep.subr.mxu0 0.0
    %357 = vmatpush1.msra.mxu0 0.0
    %358 = vmatprep.subr.mxu0 0.0
    %359 = vmatpush1.msra.mxu0 0.0
    %360 = vmatprep.subr.mxu0 0.0
    %361 = vmatpush1.msra.mxu0 0.0
    %362 = vmatprep.subr.mxu0 0.0
    %363 = vmatpush1.msra.mxu0 0.0
    %364 = vmatprep.mubr.f32.mxu0 0.0
    %365 = vmatmul.mubr.f32.gmra.mrb[0].mxu0 %v298
    %v366 = vpop.f32.mrb[0].mxu0
    %v367 = vadd.f32 %v294, %v366
    %v368 = vpop.f32.mrb[0].mxu0
    %369 = vdwg.mxu0
    %v370 = vtanh.pop %v367
    %v371 = vld [vmem:[%s6] sm:$0xff]
    %v372 = vld [vmem:[%s6 + $0x8] sm:$0xff]
    %v373 = vld [vmem:[%s6 + $0x10] sm:$0xff]
    %v374 = vld [vmem:[%s6 + $0x18] sm:$0xff]
    %v375 = vld [vmem:[%s7] sm:$0x1]
    %v377 = vlaneseq
    %v378 = vshrl.u32 %v377, 7
    %v379 = vsub.s32 0, %v378
    %v380 = vrot.slane %v375, %v379
    %v383 = vsel %vm296, %v370, 0
    %385 = vmatprep.subr.mxu0 0.0
    %386 = vmatpush1.msra.mxu0 %v371
    %387 = vmatprep.subr.mxu0 0.0
    %388 = vmatpush1.msra.mxu0 %v372
    %389 = vmatprep.subr.mxu0 0.0
    %390 = vmatpush1.msra.mxu0 %v373
    %391 = vmatprep.subr.mxu0 0.0
    %392 = vmatpush1.msra.mxu0 %v374
    %393 = vmatprep.subr.mxu0 0.0
    %394 = vmatpush1.msra.mxu0 0.0
    %395 = vmatprep.subr.mxu0 0.0
    %396 = vmatpush1.msra.mxu0 0.0
    %397 = vmatprep.subr.mxu0 0.0
    %398 = vmatpush1.msra.mxu0 0.0
    %399 = vmatprep.subr.mxu0 0.0
    %400 = vmatpush1.msra.mxu0 0.0
    %401 = vmatprep.subr.mxu0 0.0
    %402 = vmatpush1.msra.mxu0 0.0
    %403 = vmatprep.subr.mxu0 0.0
    %404 = vmatpush1.msra.mxu0 0.0
    %405 = vmatprep.subr.mxu0 0.0
    %406 = vmatpush1.msra.mxu0 0.0
    %407 = vmatprep.subr.mxu0 0.0
    %408 = vmatpush1.msra.mxu0 0.0
    %409 = vmatprep.subr.mxu0 0.0
    %410 = vmatpush1.msra.mxu0 0.0
    %411 = vmatprep.subr.mxu0 0.0
    %412 = vmatpush1.msra.mxu0 0.0
    %413 = vmatprep.subr.mxu0 0.0
    %414 = vmatpush1.msra.mxu0 0.0
    %415 = vmatprep.subr.mxu0 0.0
    %416 = vmatpush1.msra.mxu0 0.0
    %417 = vmatprep.subr.mxu0 0.0
    %418 = vmatpush1.msra.mxu0 0.0
    %419 = vmatprep.subr.mxu0 0.0
    %420 = vmatpush1.msra.mxu0 0.0
    %421 = vmatprep.subr.mxu0 0.0
    %422 = vmatpush1.msra.mxu0 0.0
    %423 = vmatprep.subr.mxu0 0.0
    %424 = vmatpush1.msra.mxu0 0.0
    %425 = vmatprep.subr.mxu0 0.0
    %426 = vmatpush1.msra.mxu0 0.0
    %427 = vmatprep.subr.mxu0 0.0
    %428 = vmatpush1.msra.mxu0 0.0
    %429 = vmatprep.subr.mxu0 0.0
    %430 = vmatpush1.msra.mxu0 0.0
    %431 = vmatprep.subr.mxu0 0.0
    %432 = vmatpush1.msra.mxu0 0.0
    %433 = vmatprep.subr.mxu0 0.0
    %434 = vmatpush1.msra.mxu0 0.0
    %435 = vmatprep.subr.mxu0 0.0
    %436 = vmatpush1.msra.mxu0 0.0
    %437 = vmatprep.subr.mxu0 0.0
    %438 = vmatpush1.msra.mxu0 0.0
    %439 = vmatprep.subr.mxu0 0.0
    %440 = vmatpush1.msra.mxu0 0.0
    %441 = vmatprep.subr.mxu0 0.0
    %442 = vmatpush1.msra.mxu0 0.0
    %443 = vmatprep.subr.mxu0 0.0
    %444 = vmatpush1.msra.mxu0 0.0
    %445 = vmatprep.subr.mxu0 0.0
    %446 = vmatpush1.msra.mxu0 0.0
    %447 = vmatprep.subr.mxu0 0.0
    %448 = vmatpush1.msra.mxu0 0.0
    %449 = vmatprep.mubr.f32.mxu0 0.0
    %450 = vmatmul.mubr.f32.gmra.mrb[0].mxu0 %v383
    %v451 = vpop.f32.mrb[0].mxu0
    %v452 = vadd.f32 %v380, %v451
    %v453 = vpop.f32.mrb[0].mxu0
    %454 = vdwg.mxu0
    %v455 = vpack.c.bf16 %v452, %v452
    %456 = vst [vmem:[#allocation2] sm:$0x1] %v455
    // Predicated region
    $region34: #{tpu_custom_call.1} parent=1 // pred_check
      _
    $region35: #{tpu_custom_call.1} parent=1 // pred_check_branch
      %458 = sbr.rel (0) target = $region37
    $region36: #{tpu_custom_call.1} parent=1 // pred_region
      %s460 = ssub.s32 16, 16
      %461 = vsyncadd [#allocation3], %s460
      %s463 = sshll.u32 [#allocation2], 4
      %s464 = int_to_ptr.vmem [resolvable:$true] %s463
      %466 = dma.vmem_to_hbm [thread:$0]  %s464, 16, %s8, [#allocation3]
    $region37: #{tpu_custom_call.1} parent=1 // pred_fallthru
      _
    // Predicated region
    $region38: #{tpu_custom_call.1} parent=1 // pred_check
      _
    $region39: #{tpu_custom_call.1} parent=1 // pred_check_branch
      %468 = sbr.rel (0) target = $region41
    $region40: #{tpu_custom_call.1} parent=1 // pred_region
      %469 = dma.done [#allocation3], 16
    $region41: #{tpu_custom_call.1} parent=1 // pred_fallthru
      _
    %470 = vsyncpa [#allocation3], 1

</llo_original>
